<compile_context>
chip_gen: v6e
topology: v6e:2x2x1
jax: 0.10.0
libtpu: 0.0.40
codegen_flags: <defaults>
</compile_context>

<pallas_src>
from functools import lru_cache, partial

import jax
import jax.numpy as jnp
from jax.experimental import pallas as pl
from jax.experimental.pallas import tpu as pltpu


@lru_cache(maxsize=None)
def _make_affine_kernel(max_val: float):
    """Kernel computing k = 2*max_val*raw - max_val with immediates folded in."""
    two_max = float(2.0 * max_val)
    off = float(max_val)

    if two_max == 1.0:
        # max_val == 0.5: single vsub.
        def kernel(raw_ref, out_ref):
            out_ref[...] = raw_ref[...] - off
    else:
        def kernel(raw_ref, out_ref):
            out_ref[...] = raw_ref[...] * two_max - off

    return kernel


@partial(jax.jit, static_argnames=("max_val",))
def _init_affine(raw_k: jax.Array, max_val: float = 0.5) -> jax.Array:
    """One-time init-time affine (the __init__ rescale), as a gridless Pallas call."""
    n_elems = raw_k.size
    return pl.pallas_call(
        _make_affine_kernel(float(max_val)),
        out_shape=jax.ShapeDtypeStruct(raw_k.shape, raw_k.dtype),
        # Gridless call: full array as a single VMEM-resident block.
        in_specs=[pl.BlockSpec(memory_space=pltpu.MemorySpace.VMEM)],
        out_specs=pl.BlockSpec(memory_space=pltpu.MemorySpace.VMEM),
        cost_estimate=pl.CostEstimate(
            flops=2 * n_elems,
            transcendentals=0,
            bytes_accessed=2 * n_elems * raw_k.dtype.itemsize,
        ),
    )(raw_k)


_EXTRA_COLS = {4: 10, 5: 16, 6: 23, 7: 30, 8: 40, 9: 50}


class VapModule:
    """JAX/Pallas equivalent of the PyTorch vap_module."""

    def __init__(self, max_val=0.5, init_value=None, zernike_terms_num=5, Nm=9, *, key=None):
        if init_value is None:
            if key is None:
                key = jax.random.PRNGKey(0)
            extra = _EXTRA_COLS[zernike_terms_num]
            k4_key, kx_key = jax.random.split(key)
            _k4 = jax.random.uniform(k4_key, (Nm, 1), dtype=jnp.float32)
            _k5 = jnp.full((Nm, 1), 0.5, dtype=jnp.float32)
            _kx = jax.random.uniform(kx_key, (Nm, extra), dtype=jnp.float32)
            # Pre-affine seed (kept only for reference checking / inspection).
            self._raw_k = jnp.concatenate([_k4, _k5, _kx], axis=1)  # (Nm, 2+extra)
            # Affine applied ONCE here (Pallas kernel), like the PyTorch __init__.
            self.k = _init_affine(self._raw_k, max_val=float(max_val))
        else:
            self._raw_k = None
            self.k = jnp.asarray(init_value, dtype=jnp.float32)

    def __call__(self):
        # forward(): return the stored parameter — no kernel launch, matching
        # the PyTorch module exactly (and the review's "don't make it a kernel").
        return self.k


if __name__ == "__main__":
    max_val = 0.5
    zernike_terms_num = 5
    Nm = 9

    key = jax.random.PRNGKey(0)
    mod = VapModule(max_val=max_val, zernike_terms_num=zernike_terms_num, Nm=Nm, key=key)

    # Forward pass.
    k = mod()
    jax.block_until_ready(k)

    # Reference check in plain JAX against the same raw seed tensor.
    k_ref = 2.0 * max_val * mod._raw_k - max_val
    assert k.shape == (Nm, 2 + 16), k.shape
    assert jnp.allclose(k, k_ref, atol=1e-6), "mismatch vs reference"
    # Repeated forward must return the identical stored parameter (no re-affine).
    assert jnp.array_equal(mod(), k)

    print("KERNEL_OK")
</pallas_src>

<mosaic_0001>
module attributes {stable_mosaic.version = 11 : i64} {
  func.func @kernel(%arg0: memref<9x18xf32, #tpu.memory_space<vmem>>, %arg1: memref<9x18xf32, #tpu.memory_space<vmem>>) attributes {dimension_semantics = [], scalar_prefetch = 0 : i64, scratch_operands = 0 : i64, tpu.core_type = #tpu.core_type<tc>} {
    %c0 = arith.constant 0 : index
    %c0_0 = arith.constant 0 : index
    %0 = vector.load %arg0[%c0, %c0_0] : memref<9x18xf32, #tpu.memory_space<vmem>>, vector<9x18xf32>
    %cst = arith.constant 5.000000e-01 : f32
    %1 = vector.broadcast %cst : f32 to vector<9x18xf32>
    %2 = arith.subf %0, %1 : vector<9x18xf32>
    %c0_1 = arith.constant 0 : index
    %c0_2 = arith.constant 0 : index
    %3 = vector.load %arg1[%c0_1, %c0_2] : memref<9x18xf32, #tpu.memory_space<vmem>>, vector<9x18xf32>
    tpu.vector_store %arg1[%c0_1, %c0_2], %2 {strides = array<i32>} : memref<9x18xf32, #tpu.memory_space<vmem>>, vector<9x18xf32>,
    return
  }
}

</mosaic_0001>

<llo_original>
// kernel: _init_affine.1
$region0: #{_init_affine.1}
  #allocation0 [shape = 'u32[]', space=smem, size = 0x4, offset = 0x4, fixed_abs, tag = 'smem constant byte address 0x4 - core index']
  #allocation1 [shape = 'u32[144,128]{1,0:T(1,128)}', space=vmem, size = 0x12000, scoped, tag = 'internal scratch']
  %s0 = inlined_call_operand.hbm [shape: f32[9,18], index: 0, kind: input, shape index: {}]
  %s1 = inlined_call_operand.hbm [shape: f32[9,18], index: 1, kind: output, shape index: {}]
  %s2 = sld [smem:[#allocation0]]
  $region18: #{_init_affine.1} parent=0
    _
  %s4 = ssub.s32 1, %s2
  %s5 = scalar_select 0, %s4, %s2
  $region1: #{_init_affine.1} parent=0
    #allocation2 [shape = 'u8[8192]{0}', space=vmem, size = 0x2000, scoped, tag = 'input window, operand 0, single buffered']
    #allocation3 [shape = 's32[1]{0}', space=sflag, size = 0x4, scoped, tag = 'scoped memory for _init_affine.1']
    #allocation4 [shape = 's32[1]{0}', space=sflag, size = 0x4, scoped, tag = 'scoped memory for _init_affine.1']
    #allocation5 [shape = 'u8[8192]{0}', space=vmem, size = 0x2000, scoped, tag = 'output window, operand 0, single buffered']
    %6 = vsyncpa [#allocation3], 0
    %7 = vsyncpa [#allocation4], 0
    // Predicated region
    $region2: #{_init_affine.1} parent=1 // pred_check
      _
    $region3: #{_init_affine.1} parent=1 // pred_check_branch
      %9 = sbr.rel (0) target = $region5
    $region4: #{_init_affine.1} parent=1 // pred_region
      %s11 = ssub.s32 256, 256
      %12 = vsyncadd [#allocation3], %s11
      %s13 = sshll.u32 [#allocation2], 4
      %s14 = int_to_ptr.vmem [resolvable:$true] %s13
      %19 = dma.hbm_to_vmem [thread:$0]  %s0, 256, %s14, [#allocation3], 128, 128, 8
    $region5: #{_init_affine.1} parent=1 // pred_fallthru
      _
    // Predicated region
    $region6: #{_init_affine.1} parent=1 // pred_check
      _
    $region7: #{_init_affine.1} parent=1 // pred_check_branch
      %21 = sbr.rel (0) target = $region9
    $region8: #{_init_affine.1} parent=1 // pred_region
      %22 = dma.done [#allocation3], 256
    $region9: #{_init_affine.1} parent=1 // pred_fallthru
      _
    %v23 = vld [vmem:[#allocation2] sm:$0xff]
    %v24 = vld [vmem:[#allocation2 + $0x8] sm:$0x1]
    %v25 = vsub.f32 %v23, 0.5
    %v26 = vsub.f32 %v24, 0.5
    %vm27 = vcmask 146432
    %28 = vst.msk [vmem:[#allocation5] sm:$0xff] %vm27, %v25
    %vm29 = vcmask 139264
    %30 = vst.msk [vmem:[#allocation5 + $0x8] sm:$0x1] %vm29, %v26
    // Predicated region
    $region10: #{_init_affine.1} parent=1 // pred_check
      _
    $region11: #{_init_affine.1} parent=1 // pred_check_branch
      %32 = sbr.rel (0) target = $region13
    $region12: #{_init_affine.1} parent=1 // pred_region
      %s34 = ssub.s32 256, 256
      %35 = vsyncadd [#allocation4], %s34
      %s36 = sshll.u32 [#allocation5], 4
      %s37 = int_to_ptr.vmem [resolvable:$true] %s36
      %42 = dma.vmem_to_hbm [thread:$0]  %s37, 256, %s1, [#allocation4], 128, 128, 8
    $region13: #{_init_affine.1} parent=1 // pred_fallthru
      _
    // Predicated region
    $region14: #{_init_affine.1} parent=1 // pred_check
      _
    $region15: #{_init_affine.1} parent=1 // pred_check_branch
      %44 = sbr.rel (0) target = $region17
    $region16: #{_init_affine.1} parent=1 // pred_region
      %45 = dma.done [#allocation4], 256
    $region17: #{_init_affine.1} parent=1 // pred_fallthru
      _
    %46 = vsyncpa [#allocation3], 1
    %47 = vsyncpa [#allocation4], 1

</llo_original>
